<compile_context>
chip_gen: v7x
topology: tpu7x:2x2x1
jax: 0.10.0
libtpu: 0.0.40
codegen_flags: <defaults>
</compile_context>

<pallas_src>
import jax
import jax.numpy as jnp
from jax.experimental import pallas as pl
from jax.experimental.pallas import tpu as pltpu

LN_EPS = 1e-5  # nn.LayerNorm default eps


def _round_up(n, m):
    return ((n + m - 1) // m) * m


def _pick_tn(h, pref=512):
    """Largest multiple of 128 that divides h and is <= pref."""
    tn = min(pref, h)
    while (h % tn) or (tn % 128):
        tn -= 128
    return tn


def _sublayer_connection_kernel(eps_ref, x_ref, xres_ref, gamma_ref, beta_ref,
                                w_ref, bias_ref, o_ref, normed_ref):
    j = pl.program_id(1)

    # ---- LayerNorm over hidden axis: once per M tile, reused across N -----
    @pl.when(j == 0)
    def _():
        x = x_ref[...].astype(jnp.float32)                      # (tm, H)
        mean = jnp.mean(x, axis=-1, keepdims=True)
        var = jnp.mean(jnp.square(x - mean), axis=-1, keepdims=True)
        xhat = (x - mean) * jax.lax.rsqrt(var + LN_EPS)
        normed = xhat * gamma_ref[...] + beta_ref[...]           # f32 math
        normed_ref[...] = normed.astype(normed_ref.dtype)        # -> bf16

    # ---- sublayer_fn: dense projection (bf16 MXU matmul, f32 accumulate) ---
    sub = jnp.dot(normed_ref[...], w_ref[...],
                  preferred_element_type=jnp.float32) + bias_ref[...]

    # ---- dropout (eval mode -> identity), scale by eps, residual add -------
    eps = eps_ref[0, 0]
    o_ref[...] = (xres_ref[...].astype(jnp.float32) + eps * sub).astype(o_ref.dtype)


def sublayer_connection(x, gamma, beta, w, bias, eps_scalar, *,
                        tm=512, tn=512, compute_dtype=jnp.bfloat16):
    """x: [B, S, H] -> [B, S, H]."""
    B, S, H = x.shape
    assert H % 128 == 0, "hidden size must be a multiple of 128"
    M = B * S

    # Effective tiles.
    tm = max(8, min(tm, _round_up(M, 8)))
    tn = _pick_tn(H, pref=tn)
    Mp = _round_up(M, tm)

    x2 = x.reshape(M, H)
    if Mp != M:
        x2 = jnp.pad(x2, ((0, Mp - M), (0, 0)))

    gamma2 = gamma.reshape(1, H).astype(jnp.float32)
    beta2 = beta.reshape(1, H).astype(jnp.float32)
    bias2 = bias.reshape(1, H).astype(jnp.float32)
    wq = w.astype(compute_dtype)                  # bf16 weights for the MXU
    eps2 = jnp.asarray(eps_scalar, jnp.float32).reshape(1, 1)

    grid = (Mp // tm, H // tn)

    # VMEM budget (double-buffered pipelined operands + scratch), with headroom,
    # capped so the request stays valid on v7x's 64 MiB physical VMEM.
    xb = x2.dtype.itemsize
    cb = jnp.dtype(compute_dtype).itemsize
    vmem_est = (2 * tm * H * xb          # x full-width tile
                + 2 * tm * tn * xb       # x residual tile
                + 2 * tm * tn * xb       # output tile
                + 2 * H * tn * cb        # W block
                + tm * H * cb            # normed scratch
                + 8 * H * 4)             # gamma/beta/bias
    vmem_limit = int(min(max(2 * vmem_est, 32 * 1024 * 1024), 64 * 1024 * 1024))

    out = pl.pallas_call(
        _sublayer_connection_kernel,
        out_shape=jax.ShapeDtypeStruct((Mp, H), x.dtype),
        grid_spec=pltpu.PrefetchScalarGridSpec(
            num_scalar_prefetch=0,
            grid=grid,
            in_specs=[
                pl.BlockSpec((1, 1), lambda i, j: (0, 0),
                             memory_space=pltpu.SMEM),             # eps
                pl.BlockSpec((tm, H), lambda i, j: (i, 0)),        # x (full row, LN)
                pl.BlockSpec((tm, tn), lambda i, j: (i, j)),       # x (residual block)
                pl.BlockSpec((1, H), lambda i, j: (0, 0)),         # gamma
                pl.BlockSpec((1, H), lambda i, j: (0, 0)),         # beta
                pl.BlockSpec((H, tn), lambda i, j: (0, j)),        # W block
                pl.BlockSpec((1, tn), lambda i, j: (0, j)),        # bias block
            ],
            out_specs=pl.BlockSpec((tm, tn), lambda i, j: (i, j)),
            scratch_shapes=[pltpu.VMEM((tm, H), compute_dtype)],   # normed(x)
        ),
        compiler_params=pltpu.CompilerParams(
            dimension_semantics=("parallel", "arbitrary"),
            vmem_limit_bytes=vmem_limit),
    )(eps2, x2, x2, gamma2, beta2, wq, bias2)

    return out[:M].reshape(B, S, H)


def _reference(x, gamma, beta, w, bias, eps_scalar, compute_dtype=jnp.bfloat16):
    xf = x.astype(jnp.float32)
    mean = jnp.mean(xf, axis=-1, keepdims=True)
    var = jnp.mean(jnp.square(xf - mean), axis=-1, keepdims=True)
    normed = (xf - mean) * jax.lax.rsqrt(var + LN_EPS) * gamma + beta
    sub = jnp.dot(normed.astype(compute_dtype), w.astype(compute_dtype),
                  preferred_element_type=jnp.float32) + bias
    return (xf + eps_scalar * sub).astype(x.dtype)


if __name__ == "__main__":
    key = jax.random.PRNGKey(0)
    B, S, H = 2, 7, 256      # M = 14 (exercises row padding), H -> two N tiles
    use_eps = False          # matches SublayerConnection(size=H, dropout=p, use_eps=False)

    kx, kw = jax.random.split(key)
    x = jax.random.normal(kx, (B, S, H), dtype=jnp.float32)

    # Deterministic parameter init (shapes from __init__):
    gamma = jnp.ones((H,), jnp.float32)      # nn.LayerNorm weight
    beta = jnp.zeros((H,), jnp.float32)      # nn.LayerNorm bias
    # eps: nn.Parameter(torch.zeros(1)) if use_eps else 1.0
    eps_scalar = 0.0 if use_eps else 1.0
    # sublayer_fn parameters (a dense projection standing in for the callable)
    w = jax.random.normal(kw, (H, H), dtype=jnp.float32) / jnp.sqrt(H)
    bias = jnp.zeros((H,), jnp.float32)

    # tn=128 here just to exercise the 2-D (M x N) grid at this small demo H.
    out = sublayer_connection(x, gamma, beta, w, bias, eps_scalar, tn=128)
    out = jax.block_until_ready(out)

    ref = _reference(x, gamma, beta, w, bias, eps_scalar)
    assert out.shape == (B, S, H)
    assert jnp.allclose(out, ref, atol=5e-3, rtol=5e-3), "mismatch vs reference"

    print("KERNEL_OK")
</pallas_src>

<mosaic_0001>
module attributes {stable_mosaic.version = 11 : i64} {
  func.func @_sublayer_connection_kernel(%arg0: i32, %arg1: i32, %arg2: memref<1x1xf32, #tpu.memory_space<smem>>, %arg3: memref<16x256xf32, #tpu.memory_space<vmem>>, %arg4: memref<16x128xf32, #tpu.memory_space<vmem>>, %arg5: memref<1x256xf32, #tpu.memory_space<vmem>>, %arg6: memref<1x256xf32, #tpu.memory_space<vmem>>, %arg7: memref<256x128xbf16, #tpu.memory_space<vmem>>, %arg8: memref<1x128xf32, #tpu.memory_space<vmem>>, %arg9: memref<16x128xf32, #tpu.memory_space<vmem>>, %arg10: memref<16x256xbf16, #tpu.memory_space<vmem>>) attributes {dimension_semantics = [#tpu.dimension_semantics<parallel>, #tpu.dimension_semantics<arbitrary>], iteration_bounds = array<i64: 1, 2>, scalar_prefetch = 0 : i64, scratch_operands = 1 : i64, tpu.core_type = #tpu.core_type<tc>, window_params = [{transform_indices = @transform_0, window_bounds = array<i64: 1, 1>}, {transform_indices = @transform_1, window_bounds = array<i64: 16, 256>}, {transform_indices = @transform_2, window_bounds = array<i64: 16, 128>}, {pipeline_mode = #tpu.pipeline_mode<synchronous>, transform_indices = @transform_3, window_bounds = array<i64: 1, 256>}, {pipeline_mode = #tpu.pipeline_mode<synchronous>, transform_indices = @transform_4, window_bounds = array<i64: 1, 256>}, {transform_indices = @transform_5, window_bounds = array<i64: 256, 128>}, {transform_indices = @transform_6, window_bounds = array<i64: 1, 128>}, {transform_indices = @transform_7, window_bounds = array<i64: 16, 128>}]} {
    %c0_i32 = arith.constant 0 : i32
    %0 = arith.cmpi eq, %arg1, %c0_i32 : i32
    %1 = arith.extui %0 : i1 to i32
    %c0_i32_0 = arith.constant 0 : i32
    %2 = arith.cmpi ne, %1, %c0_i32_0 : i32
    scf.if %2 {
      %c0_12 = arith.constant 0 : index
      %c0_13 = arith.constant 0 : index
      %15 = vector.load %arg3[%c0_12, %c0_13] : memref<16x256xf32, #tpu.memory_space<vmem>>, vector<16x256xf32>
      %cst_14 = arith.constant dense<0.000000e+00> : vector<16xf32>
      %16 = vector.multi_reduction <add>, %15, %cst_14 [1] : vector<16x256xf32> to vector<16xf32>
      %17 = vector.shape_cast %16 : vector<16xf32> to vector<16x1xf32>
      %cst_15 = arith.constant 2.560000e+02 : f32
      %18 = vector.broadcast %cst_15 : f32 to vector<16x1xf32>
      %19 = arith.divf %17, %18 : vector<16x1xf32>
      %20 = vector.broadcast %19 : vector<16x1xf32> to vector<16x256xf32>
      %21 = arith.subf %15, %20 : vector<16x256xf32>
      %22 = arith.mulf %21, %21 : vector<16x256xf32>
      %cst_16 = arith.constant dense<0.000000e+00> : vector<16xf32>
      %23 = vector.multi_reduction <add>, %22, %cst_16 [1] : vector<16x256xf32> to vector<16xf32>
      %24 = vector.shape_cast %23 : vector<16xf32> to vector<16x1xf32>
      %cst_17 = arith.constant 2.560000e+02 : f32
      %25 = vector.broadcast %cst_17 : f32 to vector<16x1xf32>
      %26 = arith.divf %24, %25 : vector<16x1xf32>
      %27 = vector.broadcast %19 : vector<16x1xf32> to vector<16x256xf32>
      %28 = arith.subf %15, %27 : vector<16x256xf32>
      %cst_18 = arith.constant 9.99999974E-6 : f32
      %29 = vector.broadcast %cst_18 : f32 to vector<16x1xf32>
      %30 = arith.addf %26, %29 : vector<16x1xf32>
      %31 = math.rsqrt %30 : vector<16x1xf32>
      %32 = vector.broadcast %31 : vector<16x1xf32> to vector<16x256xf32>
      %33 = arith.mulf %28, %32 : vector<16x256xf32>
      %c0_19 = arith.constant 0 : index
      %c0_20 = arith.constant 0 : index
      %34 = vector.load %arg5[%c0_19, %c0_20] : memref<1x256xf32, #tpu.memory_space<vmem>>, vector<1x256xf32>
      %35 = vector.broadcast %34 : vector<1x256xf32> to vector<16x256xf32>
      %36 = arith.mulf %33, %35 : vector<16x256xf32>
      %c0_21 = arith.constant 0 : index
      %c0_22 = arith.constant 0 : index
      %37 = vector.load %arg6[%c0_21, %c0_22] : memref<1x256xf32, #tpu.memory_space<vmem>>, vector<1x256xf32>
      %38 = vector.broadcast %37 : vector<1x256xf32> to vector<16x256xf32>
      %39 = arith.addf %36, %38 : vector<16x256xf32>
      %40 = arith.truncf %39 : vector<16x256xf32> to vector<16x256xbf16>
      %c0_23 = arith.constant 0 : index
      %c0_24 = arith.constant 0 : index
      %41 = vector.load %arg10[%c0_23, %c0_24] : memref<16x256xbf16, #tpu.memory_space<vmem>>, vector<16x256xbf16>
      tpu.vector_store %arg10[%c0_23, %c0_24], %40 {strides = array<i32>} : memref<16x256xbf16, #tpu.memory_space<vmem>>, vector<16x256xbf16>,
    } else {
    }
    %c0 = arith.constant 0 : index
    %c0_1 = arith.constant 0 : index
    %3 = vector.load %arg10[%c0, %c0_1] : memref<16x256xbf16, #tpu.memory_space<vmem>>, vector<16x256xbf16>
    %c0_2 = arith.constant 0 : index
    %c0_3 = arith.constant 0 : index
    %4 = vector.load %arg7[%c0_2, %c0_3] : memref<256x128xbf16, #tpu.memory_space<vmem>>, vector<256x128xbf16>
    %cst = arith.constant dense<0.000000e+00> : vector<16x128xf32>
    %5 = tpu.matmul %3, %4, %cst {dimension_numbers = #tpu.dot_dimension_numbers<[1], [0], [0], [1], [0, 0, 1, 1], [], []>} : vector<16x256xbf16>, vector<256x128xbf16>, vector<16x128xf32> -> vector<16x128xf32>
    %c0_4 = arith.constant 0 : index
    %c0_5 = arith.constant 0 : index
    %6 = vector.load %arg8[%c0_4, %c0_5] : memref<1x128xf32, #tpu.memory_space<vmem>>, vector<1x128xf32>
    %7 = vector.broadcast %6 : vector<1x128xf32> to vector<16x128xf32>
    %8 = arith.addf %5, %7 : vector<16x128xf32>
    %c0_6 = arith.constant 0 : index
    %c0_7 = arith.constant 0 : index
    %9 = memref.load %arg2[%c0_6, %c0_7] : memref<1x1xf32, #tpu.memory_space<smem>>
    %c0_8 = arith.constant 0 : index
    %c0_9 = arith.constant 0 : index
    %10 = vector.load %arg4[%c0_8, %c0_9] : memref<16x128xf32, #tpu.memory_space<vmem>>, vector<16x128xf32>
    %11 = vector.broadcast %9 : f32 to vector<16x128xf32>
    %12 = arith.mulf %11, %8 : vector<16x128xf32>
    %13 = arith.addf %10, %12 : vector<16x128xf32>
    %c0_10 = arith.constant 0 : index
    %c0_11 = arith.constant 0 : index
    %14 = vector.load %arg9[%c0_10, %c0_11] : memref<16x128xf32, #tpu.memory_space<vmem>>, vector<16x128xf32>
    tpu.vector_store %arg9[%c0_10, %c0_11], %13 {strides = array<i32>} : memref<16x128xf32, #tpu.memory_space<vmem>>, vector<16x128xf32>,
    return
  }
  func.func @transform_0(%arg0: i32, %arg1: i32) -> (i32, i32) {
    %c0_i32 = arith.constant 0 : i32
    %c0_i32_0 = arith.constant 0 : i32
    %c0_i32_1 = arith.constant 0 : i32
    return %c0_i32, %c0_i32_0 : i32, i32
  }
  func.func @transform_1(%arg0: i32, %arg1: i32) -> (i32, i32) {
    %c0_i32 = arith.constant 0 : i32
    %c0_i32_0 = arith.constant 0 : i32
    return %arg0, %c0_i32 : i32, i32
  }
  func.func @transform_2(%arg0: i32, %arg1: i32) -> (i32, i32) {
    %c0_i32 = arith.constant 0 : i32
    return %arg0, %arg1 : i32, i32
  }
  func.func @transform_3(%arg0: i32, %arg1: i32) -> (i32, i32) {
    %c0_i32 = arith.constant 0 : i32
    %c0_i32_0 = arith.constant 0 : i32
    %c0_i32_1 = arith.constant 0 : i32
    return %c0_i32, %c0_i32_0 : i32, i32
  }
  func.func @transform_4(%arg0: i32, %arg1: i32) -> (i32, i32) {
    %c0_i32 = arith.constant 0 : i32
    %c0_i32_0 = arith.constant 0 : i32
    %c0_i32_1 = arith.constant 0 : i32
    return %c0_i32, %c0_i32_0 : i32, i32
  }
  func.func @transform_5(%arg0: i32, %arg1: i32) -> (i32, i32) {
    %c0_i32 = arith.constant 0 : i32
    %c0_i32_0 = arith.constant 0 : i32
    return %c0_i32, %arg1 : i32, i32
  }
  func.func @transform_6(%arg0: i32, %arg1: i32) -> (i32, i32) {
    %c0_i32 = arith.constant 0 : i32
    %c0_i32_0 = arith.constant 0 : i32
    return %c0_i32, %arg1 : i32, i32
  }
  func.func @transform_7(%arg0: i32, %arg1: i32) -> (i32, i32) {
    %c0_i32 = arith.constant 0 : i32
    return %arg0, %arg1 : i32, i32
  }
}

</mosaic_0001>

<llo_original>
// kernel: tpu_custom_call.1
$region0: #{tpu_custom_call.1}
  #allocation0 [shape = 'u32[]', space=smem, size = 0x4, offset = 0x4, fixed_abs, tag = 'smem constant byte address 0x4 - core index']
  #allocation1 [shape = 'u32[144,128]{1,0:T(1,128)}', space=vmem, size = 0x12000, scoped, tag = 'internal scratch']
  #allocation2 [shape = 'bf16[16,256]{1,0:T(16,128)(2,1)}', space=vmem, size = 0x2000, scoped, tag = 'scratch operand']
  #allocation3 [shape = 'f32[1,1]{1,0:T(1,128)S(6)}', space=smem, size = 0x200, scoped, tag = 'scoped memory for tpu_custom_call.1']
  %s0 = inlined_call_operand.<no memory space> [shape: f32[1,1], index: 0, kind: input, shape index: {}]
  %s1 = inlined_call_operand.hbm [shape: f32[16,256], index: 1, kind: input, shape index: {}]
  %s2 = inlined_call_operand.hbm [shape: f32[16,256], index: 2, kind: input, shape index: {}]
  %s3 = inlined_call_operand.vmem [shape: f32[1,256], index: 3, kind: input, shape index: {}]
  %s4 = inlined_call_operand.vmem [shape: f32[1,256], index: 4, kind: input, shape index: {}]
  %s5 = inlined_call_operand.hbm [shape: bf16[256,256], index: 5, kind: input, shape index: {}]
  %s6 = inlined_call_operand.vmem [shape: f32[1,256], index: 6, kind: input, shape index: {}]
  %s7 = inlined_call_operand.hbm [shape: f32[16,256], index: 7, kind: output, shape index: {}]
  %s8 = sld [smem:[#allocation0]]
  $region77: #{tpu_custom_call.1} parent=0
    _
  %s10 = ssub.s32 1, %s8
  %s11 = scalar_select 0, %s10, %s8
  %12 = sst [smem:[#allocation3]] %s0
  $region1: #{tpu_custom_call.1} parent=0
    #allocation4 [shape = 'u8[16384]{0}', space=vmem, size = 0x4000, scoped, tag = 'input window, operand 1, single buffered']
    #allocation5 [shape = 's32[2]{0}', space=sflag, size = 0x8, scoped, tag = 'scoped memory for tpu_custom_call.1']
    #allocation6 [shape = 's32[2]{0}', space=sflag, size = 0x8, scoped, tag = 'scoped memory for tpu_custom_call.1']
    #allocation7 [shape = 'u8[16384]{0}', space=vmem, size = 0x4000, scoped, tag = 'input window, operand 2']
    #allocation8 [shape = 's32[2]{0}', space=sflag, size = 0x8, scoped, tag = 'scoped memory for tpu_custom_call.1']
    #allocation9 [shape = 'u8[131072]{0}', space=vmem, size = 0x20000, scoped, tag = 'input window, operand 5']
    #allocation10 [shape = 'u8[16384]{0}', space=vmem, size = 0x4000, scoped, tag = 'output window, operand 0']
    %13 = vsyncpa [#allocation5], 0
    %14 = vsyncpa [#allocation8], 0
    %s15 = scalar_lea.sflag [#allocation8], 1
    %16 = vsyncpa %s15, 0
    %17 = vsyncpa [#allocation6], 0
    %s18 = scalar_lea.sflag [#allocation6], 1
    %19 = vsyncpa %s18, 0
    loop: start=0, step=1, limit=4
    $region2: #{tpu_custom_call.1} parent=1 // loop_pre_header
      _
    $region3: #{tpu_custom_call.1} parent=1 // loop_header
      %s21 = sphi 0, %s25
      %p22 = scmp.ge.s32.totalorder %s21, 4
      %s28 = sphi 0, %s40
      %s29 = sphi 0, %s36
      %s30 = sphi 0, %s28
      %s31 = sphi 0, %s29
      %s32 = sphi 0, %s30
      %s33 = sphi 0, %s31
      %s41 = sphi 0, %s41
      %s43 = sphi 0, %s41
      %s44 = sphi 0, %s43
      %s58 = sphi 0, %s44
      %s64 = sphi 0, %s66
      %s67 = sphi 0, %s64
      %s68 = sphi 0, %s67
      %s84 = sphi 0, %s68
      %s92 = sphi 0, %s94
      %s95 = sphi 0, %s92
      %s96 = sphi 0, %s95
      %s112 = sphi 0, %s96
      %s116 = sphi 0, %s116
      %s118 = sphi 0, %s116
      %s119 = sphi 0, %s118
      %s133 = sphi 0, %s119
      %s137 = sphi 0, %s137
      %s139 = sphi 0, %s137
      %s140 = sphi 0, %s139
      %s154 = sphi 0, %s140
      %s160 = sphi 0, %s162
      %s163 = sphi 0, %s160
      %s164 = sphi 0, %s163
      %s180 = sphi 0, %s164
      %s186 = sphi 0, %s188
      %s189 = sphi 0, %s186
      %s190 = sphi 0, %s189
      %s206 = sphi 0, %s190
      %s214 = sphi 0, %s216
      %s217 = sphi 0, %s214
      %s218 = sphi 0, %s217
      %s234 = sphi 0, %s218
    $region4: #{tpu_custom_call.1} parent=1 // loop_header_branch
      %24 = sbr.rel (%p22) target = $region8
    $region5: #{tpu_custom_call.1} parent=1 // loop_body
      %s26 = ssub.s32 %s21, 1
      %s27 = ssub.s32 %s21, 2
      %s34 = sadd.s32 1, %s29
      %p35 = scmp.ge.s32.totalorder %s34, 2
      %s36 = scalar_select %p35, 0, %s34
      %s37 = sadd.s32 1, %s28
      %s38 = scalar_select %p35, %s37, %s28
      %p39 = scmp.ge.s32.totalorder %s38, 1
      %s40 = scalar_select %p39, 0, %s38
      %s42 = sadd.s32 %s41, 1
      %p45 = scmp.eq.s32.totalorder %s21, 1
      %p46 = scmp.ne.s32.totalorder %s41, %s43
      %p47 = scmp.eq.s32.totalorder %s21, 0
      %p48 = por %p46, %p47
      %p49 = scmp.ne.s32.totalorder %s41, %s43
      %p50 = scmp.eq.s32.totalorder %s26, 1
      %p51 = por %p49, %p50
      %p52 = scmp.ne.s32.totalorder %s43, %s44
      %p53 = scmp.eq.s32.totalorder %s26, 0
      %p54 = por %p52, %p53
      %p55 = scmp.ne.s32.totalorder %s43, %s44
      %p56 = scmp.eq.s32.totalorder %s27, 1
      %p57 = por %p55, %p56
      %p59 = scmp.ne.s32.totalorder %s44, %s58
      %p60 = scmp.eq.s32.totalorder %s27, 0
      %p61 = por %p59, %p60
      %s62 = ssub.s32 %s28, %s40
      %p63 = scmp.eq.s32.totalorder %s62, 0
      %s65 = sadd.s32 %s64, 1
      %s66 = scalar_select %p63, %s64, %s65
      %p69 = pneg %p63
      %p70 = scmp.eq.s32.totalorder %s21, 1
      %p71 = por %p69, %p70
      %p72 = scmp.ne.s32.totalorder %s64, %s67
      %p73 = scmp.eq.s32.totalorder %s21, 0
      %p74 = por %p72, %p73
      %p75 = scmp.ne.s32.totalorder %s64, %s67
      %p76 = scmp.eq.s32.totalorder %s26, 1
      %p77 = por %p75, %p76
      %p78 = scmp.ne.s32.totalorder %s67, %s68
      %p79 = scmp.eq.s32.totalorder %s26, 0
      %p80 = por %p78, %p79
      %p81 = scmp.ne.s32.totalorder %s67, %s68
      %p82 = scmp.eq.s32.totalorder %s27, 1
      %p83 = por %p81, %p82
      %p85 = scmp.ne.s32.totalorder %s68, %s84
      %p86 = scmp.eq.s32.totalorder %s27, 0
      %p87 = por %p85, %p86
      %s88 = ssub.s32 %s28, %s40
      %s89 = ssub.s32 %s29, %s36
      %s90 = sor.u32 %s88, %s89
      %p91 = scmp.eq.s32.totalorder %s90, 0
      %s93 = sadd.s32 %s92, 1
      %s94 = scalar_select %p91, %s92, %s93
      %p97 = pneg %p91
      %p98 = scmp.eq.s32.totalorder %s21, 1
      %p99 = por %p97, %p98
      %p100 = scmp.ne.s32.totalorder %s92, %s95
      %p101 = scmp.eq.s32.totalorder %s21, 0
      %p102 = por %p100, %p101
      %p103 = scmp.ne.s32.totalorder %s92, %s95
      %p104 = scmp.eq.s32.totalorder %s26, 1
      %p105 = por %p103, %p104
      %p106 = scmp.ne.s32.totalorder %s95, %s96
      %p107 = scmp.eq.s32.totalorder %s26, 0
      %p108 = por %p106, %p107
      %p109 = scmp.ne.s32.totalorder %s95, %s96
      %p110 = scmp.eq.s32.totalorder %s27, 1
      %p111 = por %p109, %p110
      %p113 = scmp.ne.s32.totalorder %s96, %s112
      %p114 = scmp.eq.s32.totalorder %s27, 0
      %p115 = por %p113, %p114
      %s117 = sadd.s32 %s116, 1
      %p120 = scmp.eq.s32.totalorder %s21, 1
      %p121 = scmp.ne.s32.totalorder %s116, %s118
      %p122 = scmp.eq.s32.totalorder %s21, 0
      %p123 = por %p121, %p122
      %p124 = scmp.ne.s32.totalorder %s116, %s118
      %p125 = scmp.eq.s32.totalorder %s26, 1
      %p126 = por %p124, %p125
      %p127 = scmp.ne.s32.totalorder %s118, %s119
      %p128 = scmp.eq.s32.totalorder %s26, 0
      %p129 = por %p127, %p128
      %p130 = scmp.ne.s32.totalorder %s118, %s119
      %p131 = scmp.eq.s32.totalorder %s27, 1
      %p132 = por %p130, %p131
      %p134 = scmp.ne.s32.totalorder %s119, %s133
      %p135 = scmp.eq.s32.totalorder %s27, 0
      %p136 = por %p134, %p135
      %s138 = sadd.s32 %s137, 1
      %p141 = scmp.eq.s32.totalorder %s21, 1
      %p142 = scmp.ne.s32.totalorder %s137, %s139
      %p143 = scmp.eq.s32.totalorder %s21, 0
      %p144 = por %p142, %p143
      %p145 = scmp.ne.s32.totalorder %s137, %s139
      %p146 = scmp.eq.s32.totalorder %s26, 1
      %p147 = por %p145, %p146
      %p148 = scmp.ne.s32.totalorder %s139, %s140
      %p149 = scmp.eq.s32.totalorder %s26, 0
      %p150 = por %p148, %p149
      %p151 = scmp.ne.s32.totalorder %s139, %s140
      %p152 = scmp.eq.s32.totalorder %s27, 1
      %p153 = por %p151, %p152
      %p155 = scmp.ne.s32.totalorder %s140, %s154
      %p156 = scmp.eq.s32.totalorder %s27, 0
      %p157 = por %p155, %p156
      %s158 = ssub.s32 %s29, %s36
      %p159 = scmp.eq.s32.totalorder %s158, 0
      %s161 = sadd.s32 %s160, 1
      %s162 = scalar_select %p159, %s160, %s161
      %p165 = pneg %p159
      %p166 = scmp.eq.s32.totalorder %s21, 1
      %p167 = por %p165, %p166
      %p168 = scmp.ne.s32.totalorder %s160, %s163
      %p169 = scmp.eq.s32.totalorder %s21, 0
      %p170 = por %p168, %p169
      %p171 = scmp.ne.s32.totalorder %s160, %s163
      %p172 = scmp.eq.s32.totalorder %s26, 1
      %p173 = por %p171, %p172
      %p174 = scmp.ne.s32.totalorder %s163, %s164
      %p175 = scmp.eq.s32.totalorder %s26, 0
      %p176 = por %p174, %p175
      %p177 = scmp.ne.s32.totalorder %s163, %s164
      %p178 = scmp.eq.s32.totalorder %s27, 1
      %p179 = por %p177, %p178
      %p181 = scmp.ne.s32.totalorder %s164, %s180
      %p182 = scmp.eq.s32.totalorder %s27, 0
      %p183 = por %p181, %p182
      %s184 = ssub.s32 %s29, %s36
      %p185 = scmp.eq.s32.totalorder %s184, 0
      %s187 = sadd.s32 %s186, 1
      %s188 = scalar_select %p185, %s186, %s187
      %p191 = pneg %p185
      %p192 = scmp.eq.s32.totalorder %s21, 1
      %p193 = por %p191, %p192
      %p194 = scmp.ne.s32.totalorder %s186, %s189
      %p195 = scmp.eq.s32.totalorder %s21, 0
      %p196 = por %p194, %p195
      %p197 = scmp.ne.s32.totalorder %s186, %s189
      %p198 = scmp.eq.s32.totalorder %s26, 1
      %p199 = por %p197, %p198
      %p200 = scmp.ne.s32.totalorder %s189, %s190
      %p201 = scmp.eq.s32.totalorder %s26, 0
      %p202 = por %p200, %p201
      %p203 = scmp.ne.s32.totalorder %s189, %s190
      %p204 = scmp.eq.s32.totalorder %s27, 1
      %p205 = por %p203, %p204
      %p207 = scmp.ne.s32.totalorder %s190, %s206
      %p208 = scmp.eq.s32.totalorder %s27, 0
      %p209 = por %p207, %p208
      %s210 = ssub.s32 %s28, %s40
      %s211 = ssub.s32 %s29, %s36
      %s212 = sor.u32 %s210, %s211
      %p213 = scmp.eq.s32.totalorder %s212, 0
      %s215 = sadd.s32 %s214, 1
      %s216 = scalar_select %p213, %s214, %s215
      %p219 = pneg %p213
      %p220 = scmp.eq.s32.totalorder %s21, 1
      %p221 = por %p219, %p220
      %p222 = scmp.ne.s32.totalorder %s214, %s217
      %p223 = scmp.eq.s32.totalorder %s21, 0
      %p224 = por %p222, %p223
      %p225 = scmp.ne.s32.totalorder %s214, %s217
      %p226 = scmp.eq.s32.totalorder %s26, 1
      %p227 = por %p225, %p226
      %p228 = scmp.ne.s32.totalorder %s217, %s218
      %p229 = scmp.eq.s32.totalorder %s26, 0
      %p230 = por %p228, %p229
      %p231 = scmp.ne.s32.totalorder %s217, %s218
      %p232 = scmp.eq.s32.totalorder %s27, 1
      %p233 = por %p231, %p232
      %p235 = scmp.ne.s32.totalorder %s218, %s234
      %p236 = scmp.eq.s32.totalorder %s27, 0
      %p237 = por %p235, %p236
      %p238 = scmp.le.s32.totalorder 1, %s21
      %p239 = scmp.lt.s32.totalorder %s21, 3
      %p240 = pnand %p238, %p239
      %p241 = pneg %p240
      // Predicated region
      $region9: #{tpu_custom_call.1} parent=5 // pred_check
        _
      $region10: #{tpu_custom_call.1} parent=5 // pred_check_branch
        %243 = sbr.rel (%p240) target = $region12
      $region11: #{tpu_custom_call.1} parent=5 // pred_region
        %s244 = ssub.s32 %s21, 1
        // Predicated region
        $region13: #{tpu_custom_call.1} parent=11 // pred_check
          %p245 = pneg %p54
        $region14: #{tpu_custom_call.1} parent=11 // pred_check_branch
          %247 = sbr.rel (%p245) target = $region16
        $region15: #{tpu_custom_call.1} parent=11 // pred_region
          _
        $region16: #{tpu_custom_call.1} parent=11 // pred_fallthru
          _
        // Predicated region
        $region17: #{tpu_custom_call.1} parent=11 // pred_check
          %p248 = pneg %p80
        $region18: #{tpu_custom_call.1} parent=11 // pred_check_branch
          %250 = sbr.rel (%p248) target = $region20
        $region19: #{tpu_custom_call.1} parent=11 // pred_region
          %s251 = smul.u32 2, %s30
          %s253 = ssub.s32 512, 512
          %254 = vsyncadd [#allocation5], %s253
          %s255 = smul.addr %s251, 2
          %s256 = smul.addr %s255, 128
          %s257 = scalar_lea.hbm %s1, %s256
          %s258 = sshll.u32 [#allocation4], 4
          %s259 = int_to_ptr.vmem [resolvable:$true] %s258
          %264 = dma.hbm_to_vmem [thread:$0]  %s257, 512, %s259, [#allocation5], 256, 256, 16
        $region20: #{tpu_custom_call.1} parent=11 // pred_fallthru
          _
        // Predicated region
        $region21: #{tpu_custom_call.1} parent=11 // pred_check
          %p265 = pneg %p129
        $region22: #{tpu_custom_call.1} parent=11 // pred_check_branch
          %267 = sbr.rel (%p265) target = $region24
        $region23: #{tpu_custom_call.1} parent=11 // pred_region
          _
        $region24: #{tpu_custom_call.1} parent=11 // pred_fallthru
          _
        // Predicated region
        $region25: #{tpu_custom_call.1} parent=11 // pred_check
          %p268 = pneg %p150
        $region26: #{tpu_custom_call.1} parent=11 // pred_check_branch
          %270 = sbr.rel (%p268) target = $region28
        $region27: #{tpu_custom_call.1} parent=11 // pred_region
          _
        $region28: #{tpu_custom_call.1} parent=11 // pred_fallthru
          _
      $region12: #{tpu_custom_call.1} parent=5 // pred_fallthru
        _
      %p271 = scmp.lt.s32.totalorder %s21, 2
      // Predicated region
      $region29: #{tpu_custom_call.1} parent=5 // pred_check
        %p272 = pneg %p271
      $region30: #{tpu_custom_call.1} parent=5 // pred_check_branch
        %274 = sbr.rel (%p272) target = $region32
      $region31: #{tpu_custom_call.1} parent=5 // pred_region
        // Predicated region
        $region33: #{tpu_custom_call.1} parent=31 // pred_check
          %p275 = pneg %p102
        $region34: #{tpu_custom_call.1} parent=31 // pred_check_branch
          %277 = sbr.rel (%p275) target = $region36
        $region35: #{tpu_custom_call.1} parent=31 // pred_region
          %s278 = sand.u32 %s21, 1
          %s279 = scalar_lea.sflag [#allocation8], %s278
          %s280 = sand.u32 %s92, 1
          %s281 = smul.addr %s280, 16
          %s282 = scalar_lea.vmem [#allocation7], %s281
          %s283 = smul.u32 2, %s28
          %s285 = ssub.s32 256, 256
          %286 = vsyncadd %s279, %s285
          %s287 = smul.addr %s283, 2
          %s288 = sadd.s32 %s29, %s287
          %s289 = smul.addr %s288, 128
          %s290 = scalar_lea.hbm %s2, %s289
          %s291 = sshll.u32 %s282, 4
          %s292 = int_to_ptr.vmem [resolvable:$true] %s291
          %297 = dma.hbm_to_vmem [thread:$0]  %s290, 256, %s292, %s279, 256, 128, 8
        $region36: #{tpu_custom_call.1} parent=31 // pred_fallthru
          _
        // Predicated region
        $region37: #{tpu_custom_call.1} parent=31 // pred_check
          %p298 = pneg %p170
        $region38: #{tpu_custom_call.1} parent=31 // pred_check_branch
          %300 = sbr.rel (%p298) target = $region40
        $region39: #{tpu_custom_call.1} parent=31 // pred_region
          %s301 = sand.u32 %s21, 1
          %s302 = scalar_lea.sflag [#allocation8], %s301
          %s303 = sand.u32 %s160, 1
          %s304 = smul.addr %s303, 128
          %s305 = scalar_lea.vmem [#allocation9], %s304
          %s307 = ssub.s32 2048, 2048
          %308 = vsyncadd %s302, %s307
          %s309 = smul.addr %s29, 64
          %s310 = scalar_lea.hbm %s5, %s309
          %s311 = sshll.u32 %s305, 4
          %s312 = int_to_ptr.vmem [resolvable:$true] %s311
          %317 = dma.hbm_to_vmem [thread:$0]  %s310, 2048, %s312, %s302, 128, 64, 4
        $region40: #{tpu_custom_call.1} parent=31 // pred_fallthru
          _
        // Predicated region
        $region41: #{tpu_custom_call.1} parent=31 // pred_check
          %p318 = pneg %p196
        $region42: #{tpu_custom_call.1} parent=31 // pred_check_branch
          %320 = sbr.rel (%p318) target = $region44
        $region43: #{tpu_custom_call.1} parent=31 // pred_region
          %p321 = scmp.lt.s32.totalorder %s29, 1
          %s322 = scalar_select %p321, %s29, 1
          %s323 = scalar_lea.vmem %s6, %s322
        $region44: #{tpu_custom_call.1} parent=31 // pred_fallthru
          _
      $region32: #{tpu_custom_call.1} parent=5 // pred_fallthru
        _
      %p324 = scmp.le.s32.totalorder 1, %s21
      %p325 = scmp.lt.s32.totalorder %s21, 3
      %p326 = pnand %p324, %p325
      %p327 = pneg %p326
      // Predicated region
      $region45: #{tpu_custom_call.1} parent=5 // pred_check
        _
      $region46: #{tpu_custom_call.1} parent=5 // pred_check_branch
        %329 = sbr.rel (%p326) target = $region48
      $region47: #{tpu_custom_call.1} parent=5 // pred_region
        %s330 = ssub.s32 %s21, 1
        // Predicated region
        $region49: #{tpu_custom_call.1} parent=47 // pred_check
          %p331 = pneg %p80
        $region50: #{tpu_custom_call.1} parent=47 // pred_check_branch
          %333 = sbr.rel (%p331) target = $region52
        $region51: #{tpu_custom_call.1} parent=47 // pred_region
          %334 = dma.done [#allocation5], 512
        $region52: #{tpu_custom_call.1} parent=47 // pred_fallthru
          _
        %s335 = sand.u32 %s26, 1
        %s336 = scalar_lea.sflag [#allocation8], %s335
        %s337 = sand.u32 %s95, 1
        %s338 = smul.addr %s337, 16
        %s339 = scalar_lea.vmem [#allocation7], %s338
        // Predicated region
        $region53: #{tpu_custom_call.1} parent=47 // pred_check
          %p340 = pneg %p108
        $region54: #{tpu_custom_call.1} parent=47 // pred_check_branch
          %342 = sbr.rel (%p340) target = $region56
        $region55: #{tpu_custom_call.1} parent=47 // pred_region
          %343 = dma.done %s336, 256
        $region56: #{tpu_custom_call.1} parent=47 // pred_fallthru
          _
        %s344 = sand.u32 %s26, 1
        %s345 = scalar_lea.sflag [#allocation8], %s344
        %s346 = sand.u32 %s163, 1
        %s347 = smul.addr %s346, 128
        %s348 = scalar_lea.vmem [#allocation9], %s347
        // Predicated region
        $region57: #{tpu_custom_call.1} parent=47 // pred_check
          %p349 = pneg %p176
        $region58: #{tpu_custom_call.1} parent=47 // pred_check_branch
          %351 = sbr.rel (%p349) target = $region60
        $region59: #{tpu_custom_call.1} parent=47 // pred_region
          %352 = dma.done %s345, 2048
        $region60: #{tpu_custom_call.1} parent=47 // pred_fallthru
          _
        %p353 = pneg %p54
        %p354 = pneg %p51
        %p355 = pneg %p80
        %p356 = pneg %p77
        %s357 = sand.u32 %s26, 1
        %s358 = scalar_lea.sflag [#allocation8], %s357
        %s359 = sand.u32 %s95, 1
        %s360 = smul.addr %s359, 16
        %s361 = scalar_lea.vmem [#allocation7], %s360
        %p362 = pneg %p108
        %p363 = pneg %p105
        %p364 = pneg %p129
        %p365 = pneg %p126
        %p366 = pneg %p150
        %p367 = pneg %p147
        %s368 = sand.u32 %s26, 1
        %s369 = scalar_lea.sflag [#allocation8], %s368
        %s370 = sand.u32 %s163, 1
        %s371 = smul.addr %s370, 128
        %s372 = scalar_lea.vmem [#allocation9], %s371
        %p373 = pneg %p176
        %p374 = pneg %p173
        %p375 = scmp.lt.s32.totalorder %s31, 1
        %s376 = scalar_select %p375, %s31, 1
        %s377 = scalar_lea.vmem %s6, %s376
        %p378 = pneg %p202
        %p379 = pneg %p199
        %p380 = pneg %p230
        %p381 = pneg %p227
        %s382 = sand.u32 %s217, 1
        %s383 = scalar_lea.sflag [#allocation6], %s382
        %s384 = sand.u32 %s217, 1
        %s385 = smul.addr %s384, 16
        %s386 = scalar_lea.vmem [#allocation10], %s385
        %s387 = smul.u32 2, %s30
        %s388 = smul.u32 2, %s30
        %p389 = scmp.lt.s32.totalorder %s31, 1
        %s390 = scalar_select %p389, %s31, 1
        %s391 = scalar_lea.vmem %s6, %s390
        %s392 = smul.u32 2, %s30
        %p394 = scmp.eq.s32.totalorder %s31, 0
        // Predicated region
        $region61: #{tpu_custom_call.1} parent=47 // pred_check
          %p395 = pneg %p394
        $region62: #{tpu_custom_call.1} parent=47 // pred_check_branch
          %397 = sbr.rel (%p395) target = $region64
        $region63: #{tpu_custom_call.1} parent=47 // pred_region
          %v398 = vld [vmem:[#allocation4] sm:$0xff]
          %v399 = vld [vmem:[#allocation4 + $0x8] sm:$0xff]
          %v400 = vld [vmem:[#allocation4 + $0x10] sm:$0xff]
          %v401 = vld [vmem:[#allocation4 + $0x18] sm:$0xff]
          %v402 = vadd.f32 %v398, %v399
          %403 = vadd.xlane.f32.xlu0 %v402
          %v404 = vpop.xlane.xlu0 %403
          %v405 = vadd.f32 %v400, %v401
          %406 = vadd.xlane.f32.xlu0 %v405
          %v407 = vpop.xlane.xlu0 %406
          %v408 = vrcp.pop 256.0
          %v409 = vmul.f32 %v404, %v408
          %v410 = vmul.f32 %v407, %v408
          %v411 = vsub.f32 %v398, %v409
          %v412 = vsub.f32 %v399, %v409
          %v413 = vsub.f32 %v400, %v410
          %v414 = vsub.f32 %v401, %v410
          %v415 = vmul.f32 %v411, %v411
          %v416 = vmul.f32 %v412, %v412
          %v417 = vmul.f32 %v413, %v413
          %v418 = vmul.f32 %v414, %v414
          %v419 = vadd.f32 %v415, %v416
          %420 = vadd.xlane.f32.xlu0 %v419
          %v421 = vpop.xlane.xlu0 %420
          %v422 = vadd.f32 %v417, %v418
          %423 = vadd.xlane.f32.xlu0 %v422
          %v424 = vpop.xlane.xlu0 %423
          %v425 = vmul.f32 %v421, %v408
          %v426 = vmul.f32 %v424, %v408
          %v427 = vadd.f32 %v425, 1e-05
          %v428 = vadd.f32 %v426, 1e-05
          %v429 = vrsqrt.pop %v427
          %v430 = vrsqrt.pop %v428
          %v431 = vmul.f32 %v411, %v429
          %v432 = vmul.f32 %v412, %v429
          %v433 = vmul.f32 %v413, %v430
          %v434 = vmul.f32 %v414, %v430
          %v435 = vld [vmem:[%s3] sm:$0x3]
          %v437 = vlaneseq
          %v438 = vshrl.u32 %v437, 7
          %v439 = vsub.s32 0, %v438
          %v440 = vrot.slane %v435, %v439
          %v441 = vlaneseq
          %v442 = vshrl.u32 %v441, 7
          %v443 = vsub.s32 1, %v442
          %v444 = vrot.slane %v435, %v443
          %v447 = vmul.f32 %v431, %v440
          %v448 = vmul.f32 %v432, %v444
          %v449 = vmul.f32 %v433, %v440
          %v450 = vmul.f32 %v434, %v444
          %v451 = vld [vmem:[%s4] sm:$0x3]
          %v453 = vlaneseq
          %v454 = vshrl.u32 %v453, 7
          %v455 = vsub.s32 0, %v454
          %v456 = vrot.slane %v451, %v455
          %v457 = vlaneseq
          %v458 = vshrl.u32 %v457, 7
          %v459 = vsub.s32 1, %v458
          %v460 = vrot.slane %v451, %v459
          %v463 = vadd.f32 %v447, %v456
          %v464 = vadd.f32 %v448, %v460
          %v465 = vadd.f32 %v449, %v456
          %v466 = vadd.f32 %v450, %v460
          %v467 = vpack.c.bf16 %v465, %v463
          %v468 = vpack.c.bf16 %v466, %v464
          %469 = vst [vmem:[#allocation2] sm:$0xff] %v467
          %470 = vst [vmem:[#allocation2 + $0x8] sm:$0xff] %v468
        $region64: #{tpu_custom_call.1} parent=47 // pred_fallthru
          _
        %v471 = vld [vmem:[#allocation2] sm:$0xff]
        %v472 = vld [vmem:[#allocation2 + $0x8] sm:$0xff]
        %v473 = vld [vmem:[%s348] sm:$0xf]
        %v474 = vld [vmem:[%s348 + $0x4] sm:$0xf]
        %v475 = vld [vmem:[%s348 + $0x8] sm:$0xf]
        %v476 = vld [vmem:[%s348 + $0xc] sm:$0xf]
        %v477 = vld [vmem:[%s348 + $0x10] sm:$0xf]
        %v478 = vld [vmem:[%s348 + $0x14] sm:$0xf]
        %v479 = vld [vmem:[%s348 + $0x18] sm:$0xf]
        %v480 = vld [vmem:[%s348 + $0x1c] sm:$0xf]
        %v481 = vld [vmem:[%s348 + $0x20] sm:$0xf]
        %v482 = vld [vmem:[%s348 + $0x24] sm:$0xf]
        %v483 = vld [vmem:[%s348 + $0x28] sm:$0xf]
        %v484 = vld [vmem:[%s348 + $0x2c] sm:$0xf]
        %v485 = vld [vmem:[%s348 + $0x30] sm:$0xf]
        %v486 = vld [vmem:[%s348 + $0x34] sm:$0xf]
        %v487 = vld [vmem:[%s348 + $0x38] sm:$0xf]
        %v488 = vld [vmem:[%s348 + $0x3c] sm:$0xf]
        %v489 = vld [vmem:[%s348 + $0x40] sm:$0xf]
        %v490 = vld [vmem:[%s348 + $0x44] sm:$0xf]
        %v491 = vld [vmem:[%s348 + $0x48] sm:$0xf]
        %v492 = vld [vmem:[%s348 + $0x4c] sm:$0xf]
        %v493 = vld [vmem:[%s348 + $0x50] sm:$0xf]
        %v494 = vld [vmem:[%s348 + $0x54] sm:$0xf]
        %v495 = vld [vmem:[%s348 + $0x58] sm:$0xf]
        %v496 = vld [vmem:[%s348 + $0x5c] sm:$0xf]
        %v497 = vld [vmem:[%s348 + $0x60] sm:$0xf]
        %v498 = vld [vmem:[%s348 + $0x64] sm:$0xf]
        %v499 = vld [vmem:[%s348 + $0x68] sm:$0xf]
        %v500 = vld [vmem:[%s348 + $0x6c] sm:$0xf]
        %v501 = vld [vmem:[%s348 + $0x70] sm:$0xf]
        %v502 = vld [vmem:[%s348 + $0x74] sm:$0xf]
        %v503 = vld [vmem:[%s348 + $0x78] sm:$0xf]
        %v504 = vld [vmem:[%s348 + $0x7c] sm:$0xf]
        %v505 = vld [vmem:[%s391] sm:$0x1]
        %v507 = vlaneseq
        %v508 = vshrl.u32 %v507, 7
        %v509 = vsub.s32 0, %v508
        %v510 = vrot.slane %v505, %v509
        %v544 = vunpack.c.l.b16 %v473
        %v545 = vunpack.c.l.b16 %v474
        %v546 = vunpack.c.l.b16 %v475
        %v547 = vunpack.c.l.b16 %v476
        %v548 = vunpack.c.l.b16 %v477
        %v549 = vunpack.c.l.b16 %v478
        %v550 = vunpack.c.l.b16 %v479
        %v551 = vunpack.c.l.b16 %v480
        %v552 = vunpack.c.l.b16 %v481
        %v553 = vunpack.c.l.b16 %v482
        %v554 = vunpack.c.l.b16 %v483
        %v555 = vunpack.c.l.b16 %v484
        %v556 = vunpack.c.l.b16 %v485
        %v557 = vunpack.c.l.b16 %v486
        %v558 = vunpack.c.l.b16 %v487
        %v559 = vunpack.c.l.b16 %v488
        %v560 = vunpack.c.l.b16 %v489
        %v561 = vunpack.c.l.b16 %v490
        %v562 = vunpack.c.l.b16 %v491
        %v563 = vunpack.c.l.b16 %v492
        %v564 = vunpack.c.l.b16 %v493
        %v565 = vunpack.c.l.b16 %v494
        %v566 = vunpack.c.l.b16 %v495
        %v567 = vunpack.c.l.b16 %v496
        %v568 = vunpack.c.l.b16 %v497
        %v569 = vunpack.c.l.b16 %v498
        %v570 = vunpack.c.l.b16 %v499
        %v571 = vunpack.c.l.b16 %v500
        %v572 = vunpack.c.l.b16 %v501
        %v573 = vunpack.c.l.b16 %v502
        %v574 = vunpack.c.l.b16 %v503
        %v575 = vunpack.c.l.b16 %v504
        %v576 = vpack.c.b16 %v545, %v544
        %v577 = vpack.c.b16 %v547, %v546
        %v578 = vpack.c.b16 %v549, %v548
        %v579 = vpack.c.b16 %v551, %v550
        %v580 = vpack.c.b16 %v553, %v552
        %v581 = vpack.c.b16 %v555, %v554
        %v582 = vpack.c.b16 %v557, %v556
        %v583 = vpack.c.b16 %v559, %v558
        %v584 = vpack.c.b16 %v561, %v560
        %v585 = vpack.c.b16 %v563, %v562
        %v586 = vpack.c.b16 %v565, %v564
        %v587 = vpack.c.b16 %v567, %v566
        %v588 = vpack.c.b16 %v569, %v568
        %v589 = vpack.c.b16 %v571, %v570
        %v590 = vpack.c.b16 %v573, %v572
        %v591 = vpack.c.b16 %v575, %v574
        %608 = vmatprep.subr.bf16.mxu0 0
        %609 = vmatpush1.bf16.msra.mxu0 %v576
        %610 = vmatprep.subr.bf16.mxu0 0
        %611 = vmatpush1.bf16.msra.mxu0 %v577
        %612 = vmatprep.subr.bf16.mxu0 0
        %613 = vmatpush1.bf16.msra.mxu0 %v578
        %614 = vmatprep.subr.bf16.mxu0 0
        %615 = vmatpush1.bf16.msra.mxu0 %v579
        %616 = vmatprep.subr.bf16.mxu0 0
        %617 = vmatpush1.bf16.msra.mxu0 %v580
        %618 = vmatprep.subr.bf16.mxu0 0
        %619 = vmatpush1.bf16.msra.mxu0 %v581
        %620 = vmatprep.subr.bf16.mxu0 0
        %621 = vmatpush1.bf16.msra.mxu0 %v582
        %622 = vmatprep.subr.bf16.mxu0 0
        %623 = vmatpush1.bf16.msra.mxu0 %v583
        %624 = vmatprep.subr.bf16.mxu0 0
        %625 = vmatpush1.bf16.msra.mxu0 %v584
        %626 = vmatprep.subr.bf16.mxu0 0
        %627 = vmatpush1.bf16.msra.mxu0 %v585
        %628 = vmatprep.subr.bf16.mxu0 0
        %629 = vmatpush1.bf16.msra.mxu0 %v586
        %630 = vmatprep.subr.bf16.mxu0 0
        %631 = vmatpush1.bf16.msra.mxu0 %v587
        %632 = vmatprep.subr.bf16.mxu0 0
        %633 = vmatpush1.bf16.msra.mxu0 %v588
        %634 = vmatprep.subr.bf16.mxu0 0
        %635 = vmatpush1.bf16.msra.mxu0 %v589
        %636 = vmatprep.subr.bf16.mxu0 0
        %637 = vmatpush1.bf16.msra.mxu0 %v590
        %638 = vmatprep.subr.bf16.mxu0 0
        %639 = vmatpush1.bf16.msra.mxu0 %v591
        %640 = vmatprep.mubr.bf16.mxu0 %v472
        %641 = vmatmul.mubr.bf16.gmra.mrb[0].mxu0 %v471
        %v642 = vpop.f32.mrb[0].mxu0
        %v643 = vadd.f32 %v510, %v642
        %v644 = vpop.f32.mrb[0].mxu0
        %v645 = vpop.f32.mrb[0].mxu0
        %v646 = vadd.f32 %v510, %v645
        %v647 = vpop.f32.mrb[0].mxu0
        %648 = vdwg.mxu0
        %s649 = sld [smem:[#allocation3]]
        %v650 = vld [vmem:[%s339] sm:$0xff]
        %v651 = vld [vmem:[%s339 + $0x8] sm:$0xff]
        %v652 = vstv %s649
        %v653 = vmul.f32 %v652, %v643
        %v654 = vmul.f32 %v652, %v646
        %v655 = vadd.f32 %v650, %v653
        %v656 = vadd.f32 %v651, %v654
        %657 = vst [vmem:[%s386] sm:$0xff] %v655
        %658 = vst [vmem:[%s386 + $0x8] sm:$0xff] %v656
        %s659 = sand.u32 %s217, 1
        %s660 = scalar_lea.sflag [#allocation6], %s659
        %s661 = sand.u32 %s217, 1
        %s662 = smul.addr %s661, 16
        %s663 = scalar_lea.vmem [#allocation10], %s662
        // Predicated region
        $region65: #{tpu_custom_call.1} parent=47 // pred_check
          %p664 = pneg %p227
        $region66: #{tpu_custom_call.1} parent=47 // pred_check_branch
          %666 = sbr.rel (%p664) target = $region68
        $region67: #{tpu_custom_call.1} parent=47 // pred_region
          %s667 = smul.u32 2, %s30
          %s669 = ssub.s32 256, 256
          %670 = vsyncadd %s660, %s669
          %s671 = smul.addr %s667, 2
          %s672 = sadd.s32 %s31, %s671
          %s673 = smul.addr %s672, 128
          %s674 = scalar_lea.hbm %s7, %s673
          %s675 = sshll.u32 %s663, 4
          %s676 = int_to_ptr.vmem [resolvable:$true] %s675
          %681 = dma.vmem_to_hbm [thread:$0]  %s676, 256, %s674, %s660, 128, 256, 8
        $region68: #{tpu_custom_call.1} parent=47 // pred_fallthru
          _
      $region48: #{tpu_custom_call.1} parent=5 // pred_fallthru
        _
      %p682 = scmp.le.s32.totalorder 2, %s21
      // Predicated region
      $region69: #{tpu_custom_call.1} parent=5 // pred_check
        %p683 = pneg %p682
      $region70: #{tpu_custom_call.1} parent=5 // pred_check_branch
        %685 = sbr.rel (%p683) target = $region72
      $region71: #{tpu_custom_call.1} parent=5 // pred_region
        %s686 = ssub.s32 %s21, 2
        // Predicated region
        $region73: #{tpu_custom_call.1} parent=71 // pred_check
          %p687 = pneg %p233
        $region74: #{tpu_custom_call.1} parent=71 // pred_check_branch
          %689 = sbr.rel (%p687) target = $region76
        $region75: #{tpu_custom_call.1} parent=71 // pred_region
          %s690 = sand.u32 %s218, 1
          %s691 = scalar_lea.sflag [#allocation6], %s690
          %s692 = sand.u32 %s218, 1
          %s693 = smul.addr %s692, 16
          %s694 = scalar_lea.vmem [#allocation10], %s693
          %695 = dma.done %s691, 256
        $region76: #{tpu_custom_call.1} parent=71 // pred_fallthru
          _
      $region72: #{tpu_custom_call.1} parent=5 // pred_fallthru
        _
    $region6: #{tpu_custom_call.1} parent=1 // loop_footer
      %s25 = sadd.s32 1, %s21
    $region7: #{tpu_custom_call.1} parent=1 // loop_footer_branch
      %20 = sbr.rel target = $region3
    $region8: #{tpu_custom_call.1} parent=1 // loop_exit
      _
    %696 = vsyncpa [#allocation5], 1
    %s697 = scalar_lea.sflag [#allocation5], 1
    %698 = vsyncpa %s697, 1
    %699 = vsyncpa [#allocation8], 1
    %s700 = scalar_lea.sflag [#allocation8], 1
    %701 = vsyncpa %s700, 1
    %702 = vsyncpa [#allocation6], 1
    %s703 = scalar_lea.sflag [#allocation6], 1
    %704 = vsyncpa %s703, 1

</llo_original>
